<compile_context>
chip_gen: v5e
topology: v5e:2x2
jax: 0.10.0
libtpu: 0.0.40
codegen_flags: <defaults>
</compile_context>

<pallas_src>
import functools

import jax
import jax.numpy as jnp
from jax.experimental import pallas as pl
from jax.experimental.pallas import tpu as pltpu


def _skipblock_kernel(x_ref, w_ref, b_ref, rc_ref, out_ref, stack_ref,
                      *, H, W, C, Cout):
    # x_ref:     (C, L)         L = N*H*W, batch folded onto lanes
    # w_ref:     (Cout, K_pad)  flattened conv weights, cols >= 9*C are zero
    # b_ref:     (Cout, 1)      conv bias
    # rc_ref:    (2, L) int32   row-in-image / col-in-image per lane
    # out_ref:   (Cout + C, L)  rows [0,Cout): relu(conv); rows [Cout,): x
    # stack_ref: (K_pad, L) f32 VMEM scratch holding the im2col stack
    L = x_ref.shape[-1]
    K = 9 * C
    K_pad = stack_ref.shape[0]

    x = x_ref[...].astype(jnp.float32)                     # (C, L)
    row = rc_ref[0:1, :]                                    # (1, L)
    col = rc_ref[1:2, :]                                    # (1, L)

    # Hoisted (1, L)-wide border predicates (emulate SAME zero padding); they
    # also kill every lane the circular roll wraps across image/batch seams.
    row_ok = {-1: row >= 1, 0: None, 1: row <= H - 2}
    col_ok = {-1: col >= 1, 0: None, 1: col <= W - 2}
    tap_mask = {}
    for dh in (-1, 0, 1):
        for dw in (-1, 0, 1):
            m = row_ok[dh]
            if col_ok[dw] is not None:
                m = col_ok[dw] if m is None else (m & col_ok[dw])
            tap_mask[(dh, dw)] = m

    # Zero the (zero-weighted) pad rows so uninitialized VMEM never reaches
    # the MXU; rows [0, 9*C) are overwritten below.
    if K_pad > K:
        stack_ref[K:, :] = jnp.zeros((K_pad - K, L), jnp.float32)

    # Build the im2col stack: tap k = kh*3+kw occupies rows [k*C, (k+1)*C).
    for kh in range(3):
        for kw in range(3):
            dh, dw = kh - 1, kw - 1
            s = dh * W + dw                                  # flat spatial offset
            # shifted[c, q] == x[c, q + s] for every mask-valid lane q.
            shifted = pltpu.roll(x, shift=(-s) % L, axis=1) if s != 0 else x
            m = tap_mask[(dh, dw)]
            if m is not None:
                shifted = jnp.where(m, shifted, 0.0)
            k = kh * 3 + kw
            stack_ref[k * C:(k + 1) * C, :] = shifted

    # Single fused MXU dot over the whole batch: (Cout, K_pad) @ (K_pad, L).
    acc = jnp.dot(w_ref[...].astype(jnp.float32), stack_ref[...],
                  preferred_element_type=jnp.float32)
    acc = jnp.maximum(acc + b_ref[...].astype(jnp.float32), 0.0)   # bias + ReLU

    # One full-tile, lane-dense store: conv rows then identity-skip rows.
    out_ref[...] = jnp.concatenate([acc, x], axis=0).astype(out_ref.dtype)


def skip_block_forward(x_nchw, w_hwio, b):
    """SkipBlock forward. x_nchw: (N, C, H, W) -> (N, Cout + C, H, W)."""
    N, C, H, W = x_nchw.shape
    Cout = w_hwio.shape[3]
    HW = H * W
    L = N * HW
    K = 9 * C
    K_pad = -(-K // 8) * 8                                   # sublane multiple

    # Fold batch onto the lane axis: (N, C, H, W) -> (C, N*H*W).  Tiny one-time
    # relayout in the wrapper; every in-kernel access is then full-lane-width.
    x_flat = jnp.transpose(x_nchw, (1, 0, 2, 3)).reshape(C, L)

    # HWIO (3,3,C,Cout) -> (Cout, 9*C) with w_flat[co, k*C+ci] = w[kh,kw,ci,co],
    # zero-padded to K_pad columns (matching the zeroed scratch pad rows).
    w_flat = jnp.transpose(w_hwio.reshape(9, C, Cout), (2, 0, 1)).reshape(Cout, K)
    w_full = jnp.zeros((Cout, K_pad), w_flat.dtype).at[:, :K].set(w_flat)
    b2 = b.reshape(Cout, 1)

    # Precomputed position-within-image indices (handles any H/W and the batch
    # fold; replaces in-kernel integer div/mod and the unrolled compare chain).
    p = jnp.arange(L, dtype=jnp.int32) % HW
    rc = jnp.stack([p // W, p % W], axis=0).astype(jnp.int32)      # (2, L)

    kernel = functools.partial(_skipblock_kernel, H=H, W=W, C=C, Cout=Cout)

    out_flat = pl.pallas_call(
        kernel,
        out_shape=jax.ShapeDtypeStruct((Cout + C, L), x_nchw.dtype),
        grid=(1,),                                  # single step: work >> step cost not yet true
        in_specs=[
            pl.BlockSpec((C, L), lambda i: (0, 0)),
            pl.BlockSpec((Cout, K_pad), lambda i: (0, 0)),
            pl.BlockSpec((Cout, 1), lambda i: (0, 0)),
            pl.BlockSpec((2, L), lambda i: (0, 0)),
        ],
        out_specs=pl.BlockSpec((Cout + C, L), lambda i: (0, 0)),
        scratch_shapes=[pltpu.VMEM((K_pad, L), jnp.float32)],
    )(x_flat, w_full, b2, rc)

    # Unfold back to NCHW (tiny wrapper relayout).
    return out_flat.reshape(Cout + C, N, H, W).transpose(1, 0, 2, 3)


def reference_forward(x_nchw, w_hwio, b):
    """Pure-JAX reference matching the PyTorch module semantics."""
    w_oihw = jnp.transpose(w_hwio, (3, 2, 0, 1))
    y = jax.lax.conv_general_dilated(
        x_nchw, w_oihw, window_strides=(1, 1), padding="SAME",
        dimension_numbers=("NCHW", "OIHW", "NCHW"))
    y = jax.nn.relu(y + b[None, :, None, None])
    return jnp.concatenate([y, x_nchw], axis=1)


if __name__ == "__main__":
    N, C, H, W = 2, 4, 16, 16
    Cout = C  # Conv2d(C, C, 3, padding=1)

    key = jax.random.PRNGKey(0)
    kx, kw, kb = jax.random.split(key, 3)
    x = jax.random.normal(kx, (N, C, H, W), dtype=jnp.float32)
    fan_in = C * 3 * 3
    w = jax.random.normal(kw, (3, 3, C, Cout), dtype=jnp.float32) * (2.0 / fan_in) ** 0.5
    b = jax.random.normal(kb, (Cout,), dtype=jnp.float32) * 0.01

    out = jax.block_until_ready(skip_block_forward(x, w, b))
    ref = jax.block_until_ready(reference_forward(x, w, b))

    assert out.shape == (N, Cout + C, H, W), out.shape
    assert jnp.allclose(out, ref, atol=1e-5, rtol=1e-5), float(jnp.max(jnp.abs(out - ref)))
    print("KERNEL_OK")
</pallas_src>

<mosaic_0001>
module attributes {stable_mosaic.version = 11 : i64} {
  func.func @_skipblock_kernel(%arg0: i32, %arg1: memref<4x512xf32, #tpu.memory_space<vmem>>, %arg2: memref<4x40xf32, #tpu.memory_space<vmem>>, %arg3: memref<4x1xf32, #tpu.memory_space<vmem>>, %arg4: memref<2x512xi32, #tpu.memory_space<vmem>>, %arg5: memref<8x512xf32, #tpu.memory_space<vmem>>, %arg6: memref<40x512xf32, #tpu.memory_space<vmem>>) attributes {dimension_semantics = [#tpu.dimension_semantics<arbitrary>], iteration_bounds = array<i64: 1>, scalar_prefetch = 0 : i64, scratch_operands = 1 : i64, tpu.core_type = #tpu.core_type<tc>, window_params = [{pipeline_mode = #tpu.pipeline_mode<synchronous>, transform_indices = @transform_0, window_bounds = array<i64: 4, 512>}, {pipeline_mode = #tpu.pipeline_mode<synchronous>, transform_indices = @transform_1, window_bounds = array<i64: 4, 40>}, {pipeline_mode = #tpu.pipeline_mode<synchronous>, transform_indices = @transform_2, window_bounds = array<i64: 4, 1>}, {pipeline_mode = #tpu.pipeline_mode<synchronous>, transform_indices = @transform_3, window_bounds = array<i64: 2, 512>}, {pipeline_mode = #tpu.pipeline_mode<synchronous>, transform_indices = @transform_4, window_bounds = array<i64: 8, 512>}]} {
    %c0 = arith.constant 0 : index
    %c0_0 = arith.constant 0 : index
    %0 = vector.load %arg1[%c0, %c0_0] : memref<4x512xf32, #tpu.memory_space<vmem>>, vector<4x512xf32>
    %c0_1 = arith.constant 0 : index
    %c0_2 = arith.constant 0 : index
    %1 = vector.load %arg4[%c0_1, %c0_2] : memref<2x512xi32, #tpu.memory_space<vmem>>, vector<1x512xi32>
    %c1 = arith.constant 1 : index
    %c0_3 = arith.constant 0 : index
    %2 = vector.load %arg4[%c1, %c0_3] : memref<2x512xi32, #tpu.memory_space<vmem>>, vector<1x512xi32>
    %c1_i32 = arith.constant 1 : i32
    %3 = vector.broadcast %c1_i32 : i32 to vector<1x512xi32>
    %4 = arith.cmpi sge, %1, %3 : vector<1x512xi32>
    %c14_i32 = arith.constant 14 : i32
    %5 = vector.broadcast %c14_i32 : i32 to vector<1x512xi32>
    %6 = arith.cmpi sle, %1, %5 : vector<1x512xi32>
    %c1_i32_4 = arith.constant 1 : i32
    %7 = vector.broadcast %c1_i32_4 : i32 to vector<1x512xi32>
    %8 = arith.cmpi sge, %2, %7 : vector<1x512xi32>
    %c14_i32_5 = arith.constant 14 : i32
    %9 = vector.broadcast %c14_i32_5 : i32 to vector<1x512xi32>
    %10 = arith.cmpi sle, %2, %9 : vector<1x512xi32>
    %11 = arith.andi %4, %8 : vector<1x512xi1>
    %12 = arith.andi %4, %10 : vector<1x512xi1>
    %13 = arith.andi %6, %8 : vector<1x512xi1>
    %14 = arith.andi %6, %10 : vector<1x512xi1>
    %cst = arith.constant 0.000000e+00 : f32
    %15 = vector.broadcast %cst : f32 to vector<4x512xf32>
    %c36 = arith.constant 36 : index
    %c0_6 = arith.constant 0 : index
    %16 = vector.load %arg6[%c36, %c0_6] : memref<40x512xf32, #tpu.memory_space<vmem>>, vector<4x512xf32>
    tpu.vector_store %arg6[%c36, %c0_6], %15 {strides = array<i32>} : memref<40x512xf32, #tpu.memory_space<vmem>>, vector<4x512xf32>,
    %c17_i32 = arith.constant 17 : i32
    %17 = tpu.dynamic_rotate %0 by %c17_i32 dim 1 : vector<4x512xf32>, i32 -> vector<4x512xf32>
    %cst_7 = arith.constant 0.000000e+00 : f32
    %18 = vector.shape_cast %11 : vector<1x512xi1> to vector<1x512xi1>
    %19 = vector.broadcast %18 : vector<1x512xi1> to vector<4x512xi1>
    %20 = vector.broadcast %cst_7 : f32 to vector<4x512xf32>
    %21 = arith.select %19, %17, %20 : vector<4x512xi1>, vector<4x512xf32>
    %c0_8 = arith.constant 0 : index
    %c0_9 = arith.constant 0 : index
    %22 = vector.load %arg6[%c0_8, %c0_9] : memref<40x512xf32, #tpu.memory_space<vmem>>, vector<4x512xf32>
    tpu.vector_store %arg6[%c0_8, %c0_9], %21 {strides = array<i32>} : memref<40x512xf32, #tpu.memory_space<vmem>>, vector<4x512xf32>,
    %c16_i32 = arith.constant 16 : i32
    %23 = tpu.dynamic_rotate %0 by %c16_i32 dim 1 : vector<4x512xf32>, i32 -> vector<4x512xf32>
    %cst_10 = arith.constant 0.000000e+00 : f32
    %24 = vector.shape_cast %4 : vector<1x512xi1> to vector<1x512xi1>
    %25 = vector.broadcast %24 : vector<1x512xi1> to vector<4x512xi1>
    %26 = vector.broadcast %cst_10 : f32 to vector<4x512xf32>
    %27 = arith.select %25, %23, %26 : vector<4x512xi1>, vector<4x512xf32>
    %c4 = arith.constant 4 : index
    %c0_11 = arith.constant 0 : index
    %28 = vector.load %arg6[%c4, %c0_11] : memref<40x512xf32, #tpu.memory_space<vmem>>, vector<4x512xf32>
    tpu.vector_store %arg6[%c4, %c0_11], %27 {strides = array<i32>} : memref<40x512xf32, #tpu.memory_space<vmem>>, vector<4x512xf32>,
    %c15_i32 = arith.constant 15 : i32
    %29 = tpu.dynamic_rotate %0 by %c15_i32 dim 1 : vector<4x512xf32>, i32 -> vector<4x512xf32>
    %cst_12 = arith.constant 0.000000e+00 : f32
    %30 = vector.shape_cast %12 : vector<1x512xi1> to vector<1x512xi1>
    %31 = vector.broadcast %30 : vector<1x512xi1> to vector<4x512xi1>
    %32 = vector.broadcast %cst_12 : f32 to vector<4x512xf32>
    %33 = arith.select %31, %29, %32 : vector<4x512xi1>, vector<4x512xf32>
    %c8 = arith.constant 8 : index
    %c0_13 = arith.constant 0 : index
    %34 = vector.load %arg6[%c8, %c0_13] : memref<40x512xf32, #tpu.memory_space<vmem>>, vector<4x512xf32>
    tpu.vector_store %arg6[%c8, %c0_13], %33 {strides = array<i32>} : memref<40x512xf32, #tpu.memory_space<vmem>>, vector<4x512xf32>,
    %c1_i32_14 = arith.constant 1 : i32
    %35 = tpu.dynamic_rotate %0 by %c1_i32_14 dim 1 : vector<4x512xf32>, i32 -> vector<4x512xf32>
    %cst_15 = arith.constant 0.000000e+00 : f32
    %36 = vector.shape_cast %8 : vector<1x512xi1> to vector<1x512xi1>
    %37 = vector.broadcast %36 : vector<1x512xi1> to vector<4x512xi1>
    %38 = vector.broadcast %cst_15 : f32 to vector<4x512xf32>
    %39 = arith.select %37, %35, %38 : vector<4x512xi1>, vector<4x512xf32>
    %c12 = arith.constant 12 : index
    %c0_16 = arith.constant 0 : index
    %40 = vector.load %arg6[%c12, %c0_16] : memref<40x512xf32, #tpu.memory_space<vmem>>, vector<4x512xf32>
    tpu.vector_store %arg6[%c12, %c0_16], %39 {strides = array<i32>} : memref<40x512xf32, #tpu.memory_space<vmem>>, vector<4x512xf32>,
    %c16 = arith.constant 16 : index
    %c0_17 = arith.constant 0 : index
    %41 = vector.load %arg6[%c16, %c0_17] : memref<40x512xf32, #tpu.memory_space<vmem>>, vector<4x512xf32>
    tpu.vector_store %arg6[%c16, %c0_17], %0 {strides = array<i32>} : memref<40x512xf32, #tpu.memory_space<vmem>>, vector<4x512xf32>,
    %c511_i32 = arith.constant 511 : i32
    %42 = tpu.dynamic_rotate %0 by %c511_i32 dim 1 : vector<4x512xf32>, i32 -> vector<4x512xf32>
    %cst_18 = arith.constant 0.000000e+00 : f32
    %43 = vector.shape_cast %10 : vector<1x512xi1> to vector<1x512xi1>
    %44 = vector.broadcast %43 : vector<1x512xi1> to vector<4x512xi1>
    %45 = vector.broadcast %cst_18 : f32 to vector<4x512xf32>
    %46 = arith.select %44, %42, %45 : vector<4x512xi1>, vector<4x512xf32>
    %c20 = arith.constant 20 : index
    %c0_19 = arith.constant 0 : index
    %47 = vector.load %arg6[%c20, %c0_19] : memref<40x512xf32, #tpu.memory_space<vmem>>, vector<4x512xf32>
    tpu.vector_store %arg6[%c20, %c0_19], %46 {strides = array<i32>} : memref<40x512xf32, #tpu.memory_space<vmem>>, vector<4x512xf32>,
    %c497_i32 = arith.constant 497 : i32
    %48 = tpu.dynamic_rotate %0 by %c497_i32 dim 1 : vector<4x512xf32>, i32 -> vector<4x512xf32>
    %cst_20 = arith.constant 0.000000e+00 : f32
    %49 = vector.shape_cast %13 : vector<1x512xi1> to vector<1x512xi1>
    %50 = vector.broadcast %49 : vector<1x512xi1> to vector<4x512xi1>
    %51 = vector.broadcast %cst_20 : f32 to vector<4x512xf32>
    %52 = arith.select %50, %48, %51 : vector<4x512xi1>, vector<4x512xf32>
    %c24 = arith.constant 24 : index
    %c0_21 = arith.constant 0 : index
    %53 = vector.load %arg6[%c24, %c0_21] : memref<40x512xf32, #tpu.memory_space<vmem>>, vector<4x512xf32>
    tpu.vector_store %arg6[%c24, %c0_21], %52 {strides = array<i32>} : memref<40x512xf32, #tpu.memory_space<vmem>>, vector<4x512xf32>,
    %c496_i32 = arith.constant 496 : i32
    %54 = tpu.dynamic_rotate %0 by %c496_i32 dim 1 : vector<4x512xf32>, i32 -> vector<4x512xf32>
    %cst_22 = arith.constant 0.000000e+00 : f32
    %55 = vector.shape_cast %6 : vector<1x512xi1> to vector<1x512xi1>
    %56 = vector.broadcast %55 : vector<1x512xi1> to vector<4x512xi1>
    %57 = vector.broadcast %cst_22 : f32 to vector<4x512xf32>
    %58 = arith.select %56, %54, %57 : vector<4x512xi1>, vector<4x512xf32>
    %c28 = arith.constant 28 : index
    %c0_23 = arith.constant 0 : index
    %59 = vector.load %arg6[%c28, %c0_23] : memref<40x512xf32, #tpu.memory_space<vmem>>, vector<4x512xf32>
    tpu.vector_store %arg6[%c28, %c0_23], %58 {strides = array<i32>} : memref<40x512xf32, #tpu.memory_space<vmem>>, vector<4x512xf32>,
    %c495_i32 = arith.constant 495 : i32
    %60 = tpu.dynamic_rotate %0 by %c495_i32 dim 1 : vector<4x512xf32>, i32 -> vector<4x512xf32>
    %cst_24 = arith.constant 0.000000e+00 : f32
    %61 = vector.shape_cast %14 : vector<1x512xi1> to vector<1x512xi1>
    %62 = vector.broadcast %61 : vector<1x512xi1> to vector<4x512xi1>
    %63 = vector.broadcast %cst_24 : f32 to vector<4x512xf32>
    %64 = arith.select %62, %60, %63 : vector<4x512xi1>, vector<4x512xf32>
    %c32 = arith.constant 32 : index
    %c0_25 = arith.constant 0 : index
    %65 = vector.load %arg6[%c32, %c0_25] : memref<40x512xf32, #tpu.memory_space<vmem>>, vector<4x512xf32>
    tpu.vector_store %arg6[%c32, %c0_25], %64 {strides = array<i32>} : memref<40x512xf32, #tpu.memory_space<vmem>>, vector<4x512xf32>,
    %c0_26 = arith.constant 0 : index
    %c0_27 = arith.constant 0 : index
    %66 = vector.load %arg2[%c0_26, %c0_27] : memref<4x40xf32, #tpu.memory_space<vmem>>, vector<4x40xf32>
    %c0_28 = arith.constant 0 : index
    %c0_29 = arith.constant 0 : index
    %67 = vector.load %arg6[%c0_28, %c0_29] : memref<40x512xf32, #tpu.memory_space<vmem>>, vector<40x512xf32>
    %cst_30 = arith.constant dense<0.000000e+00> : vector<4x512xf32>
    %68 = tpu.matmul %66, %67, %cst_30 {dimension_numbers = #tpu.dot_dimension_numbers<[1], [0], [0], [1], [0, 0, 1, 1], [], []>} : vector<4x40xf32>, vector<40x512xf32>, vector<4x512xf32> -> vector<4x512xf32>
    %c0_31 = arith.constant 0 : index
    %c0_32 = arith.constant 0 : index
    %69 = vector.load %arg3[%c0_31, %c0_32] : memref<4x1xf32, #tpu.memory_space<vmem>>, vector<4x1xf32>
    %70 = vector.broadcast %69 : vector<4x1xf32> to vector<4x512xf32>
    %71 = arith.addf %68, %70 : vector<4x512xf32>
    %cst_33 = arith.constant 0.000000e+00 : f32
    %72 = vector.broadcast %cst_33 : f32 to vector<4x512xf32>
    %73 = arith.maximumf %71, %72 : vector<4x512xf32>
    %74 = tpu.concatenate %73, %0 in 0 : vector<4x512xf32>, vector<4x512xf32> -> vector<8x512xf32>
    %c0_34 = arith.constant 0 : index
    %c0_35 = arith.constant 0 : index
    %75 = vector.load %arg5[%c0_34, %c0_35] : memref<8x512xf32, #tpu.memory_space<vmem>>, vector<8x512xf32>
    tpu.vector_store %arg5[%c0_34, %c0_35], %74 {strides = array<i32>} : memref<8x512xf32, #tpu.memory_space<vmem>>, vector<8x512xf32>,
    return
  }
  func.func @transform_0(%arg0: i32) -> (i32, i32) {
    %c0_i32 = arith.constant 0 : i32
    %c0_i32_0 = arith.constant 0 : i32
    %c0_i32_1 = arith.constant 0 : i32
    return %c0_i32, %c0_i32_0 : i32, i32
  }
  func.func @transform_1(%arg0: i32) -> (i32, i32) {
    %c0_i32 = arith.constant 0 : i32
    %c0_i32_0 = arith.constant 0 : i32
    %c0_i32_1 = arith.constant 0 : i32
    return %c0_i32, %c0_i32_0 : i32, i32
  }
  func.func @transform_2(%arg0: i32) -> (i32, i32) {
    %c0_i32 = arith.constant 0 : i32
    %c0_i32_0 = arith.constant 0 : i32
    %c0_i32_1 = arith.constant 0 : i32
    return %c0_i32, %c0_i32_0 : i32, i32
  }
  func.func @transform_3(%arg0: i32) -> (i32, i32) {
    %c0_i32 = arith.constant 0 : i32
    %c0_i32_0 = arith.constant 0 : i32
    %c0_i32_1 = arith.constant 0 : i32
    return %c0_i32, %c0_i32_0 : i32, i32
  }
  func.func @transform_4(%arg0: i32) -> (i32, i32) {
    %c0_i32 = arith.constant 0 : i32
    %c0_i32_0 = arith.constant 0 : i32
    %c0_i32_1 = arith.constant 0 : i32
    return %c0_i32, %c0_i32_0 : i32, i32
  }
}

</mosaic_0001>

<llo_original>
// kernel: tpu_custom_call.1
$region0: #{tpu_custom_call.1}
  #allocation0 [shape = 'u32[]', space=smem, size = 0x4, offset = 0x4, fixed_abs, tag = 'smem constant byte address 0x4 - core index']
  #allocation1 [shape = 'u32[72,128]{1,0:T(1,128)}', space=vmem, size = 0x9000, scoped, tag = 'internal scratch']
  #allocation2 [shape = 'f32[40,512]{1,0:T(8,128)}', space=vmem, size = 0x14000, scoped, tag = 'scratch operand']
  %s0 = inlined_call_operand.hbm [shape: f32[4,512], index: 0, kind: input, shape index: {}]
  %s1 = inlined_call_operand.vmem [shape: f32[4,40], index: 1, kind: input, shape index: {}]
  %s2 = inlined_call_operand.vmem [shape: f32[4,1], index: 2, kind: input, shape index: {}]
  %s3 = inlined_call_operand.hbm [shape: s32[2,512], index: 3, kind: input, shape index: {}]
  %s4 = inlined_call_operand.hbm [shape: f32[8,512], index: 4, kind: output, shape index: {}]
  %s5 = sld [smem:[#allocation0]]
  $region34: #{tpu_custom_call.1} parent=0
    _
  %s7 = ssub.s32 1, %s5
  %s8 = scalar_select 0, %s7, %s5
  $region1: #{tpu_custom_call.1} parent=0
    #allocation3 [shape = 'u8[8192]{0}', space=vmem, size = 0x2000, scoped, tag = 'input window, operand 0, single buffered']
    #allocation4 [shape = 's32[1]{0}', space=sflag, size = 0x4, scoped, tag = 'scoped memory for tpu_custom_call.1']
    #allocation5 [shape = 's32[1]{0}', space=sflag, size = 0x4, scoped, tag = 'scoped memory for tpu_custom_call.1']
    #allocation6 [shape = 'u8[4096]{0}', space=vmem, size = 0x1000, scoped, tag = 'input window, operand 3, single buffered']
    #allocation7 [shape = 's32[1]{0}', space=sflag, size = 0x4, scoped, tag = 'scoped memory for tpu_custom_call.1']
    #allocation8 [shape = 'u8[16384]{0}', space=vmem, size = 0x4000, scoped, tag = 'output window, operand 0, single buffered']
    %9 = vsyncpa [#allocation4], 0
    %10 = vsyncpa [#allocation7], 0
    %11 = vsyncpa [#allocation5], 0
    // Predicated region
    $region2: #{tpu_custom_call.1} parent=1 // pred_check
      _
    $region3: #{tpu_custom_call.1} parent=1 // pred_check_branch
      %13 = sbr.rel (0) target = $region5
    $region4: #{tpu_custom_call.1} parent=1 // pred_region
      %15 = vsyncadd [#allocation4], 0
      %s17 = sshll.u32 %s0, 4
      %s18 = int_to_ptr.hbm [resolvable:$true] %s17
      %s19 = sshll.u32 [#allocation3], 4
      %s20 = int_to_ptr.vmem [resolvable:$true] %s19
      %22 = dma.hbm_to_vmem [thread:$0]  %s18, 256, %s20, [#allocation4]
    $region5: #{tpu_custom_call.1} parent=1 // pred_fallthru
      _
    // Predicated region
    $region6: #{tpu_custom_call.1} parent=1 // pred_check
      _
    $region7: #{tpu_custom_call.1} parent=1 // pred_check_branch
      %24 = sbr.rel (0) target = $region9
    $region8: #{tpu_custom_call.1} parent=1 // pred_region
      _
    $region9: #{tpu_custom_call.1} parent=1 // pred_fallthru
      _
    // Predicated region
    $region10: #{tpu_custom_call.1} parent=1 // pred_check
      _
    $region11: #{tpu_custom_call.1} parent=1 // pred_check_branch
      %26 = sbr.rel (0) target = $region13
    $region12: #{tpu_custom_call.1} parent=1 // pred_region
      _
    $region13: #{tpu_custom_call.1} parent=1 // pred_fallthru
      _
    // Predicated region
    $region14: #{tpu_custom_call.1} parent=1 // pred_check
      _
    $region15: #{tpu_custom_call.1} parent=1 // pred_check_branch
      %28 = sbr.rel (0) target = $region17
    $region16: #{tpu_custom_call.1} parent=1 // pred_region
      %30 = vsyncadd [#allocation7], 0
      %s32 = sshll.u32 %s3, 4
      %s33 = int_to_ptr.hbm [resolvable:$true] %s32
      %s34 = sshll.u32 [#allocation6], 4
      %s35 = int_to_ptr.vmem [resolvable:$true] %s34
      %37 = dma.hbm_to_vmem [thread:$0]  %s33, 128, %s35, [#allocation7]
    $region17: #{tpu_custom_call.1} parent=1 // pred_fallthru
      _
    // Predicated region
    $region18: #{tpu_custom_call.1} parent=1 // pred_check
      _
    $region19: #{tpu_custom_call.1} parent=1 // pred_check_branch
      %39 = sbr.rel (0) target = $region21
    $region20: #{tpu_custom_call.1} parent=1 // pred_region
      %41 = dma.done [#allocation4], 256
    $region21: #{tpu_custom_call.1} parent=1 // pred_fallthru
      _
    // Predicated region
    $region22: #{tpu_custom_call.1} parent=1 // pred_check
      _
    $region23: #{tpu_custom_call.1} parent=1 // pred_check_branch
      %43 = sbr.rel (0) target = $region25
    $region24: #{tpu_custom_call.1} parent=1 // pred_region
      %45 = dma.done [#allocation7], 128
    $region25: #{tpu_custom_call.1} parent=1 // pred_fallthru
      _
    %v46 = vld [vmem:[#allocation3] sm:$0xff]
    %v47 = vld [vmem:[#allocation3 + $0x8] sm:$0xff]
    %v48 = vld [vmem:[#allocation6] ss:$2 sm:$0xf]
    %s49 = scalar_lea.vmem [#allocation6], 1
    %v50 = vld [vmem:[%s49] ss:$2 sm:$0xf]
    %vm51 = vcmp.ge.s32.totalorder %v48, 1
    %vm52 = vcmp.le.s32.totalorder %v48, 14
    %vm53 = vcmp.ge.s32.totalorder %v50, 1
    %vm54 = vcmp.le.s32.totalorder %v50, 14
    %vm55 = vmand %vm51, %vm53
    %vm56 = vmand %vm51, %vm54
    %vm57 = vmand %vm52, %vm53
    %vm58 = vmand %vm52, %vm54
    %59 = vst [vmem:[#allocation2 + $0x80] sm:$0xf0] 0.0
    %60 = vst [vmem:[#allocation2 + $0x88] sm:$0xf0] 0.0
    %61 = vst [vmem:[#allocation2 + $0x90] sm:$0xf0] 0.0
    %62 = vst [vmem:[#allocation2 + $0x98] sm:$0xf0] 0.0
    %65 = vst [vmem:[#allocation1] ss:$2 sm:$0xff] %v46
    %s66 = scalar_lea.vmem [#allocation1], 16
    %67 = vst [vmem:[%s66] ss:$2 sm:$0xff] %v47
    %v68 = vld.sshfl [vmem:[#allocation1] sm:$0xff pattern:$0x75316420]
    %v69 = vld.sshfl [vmem:[#allocation1 + $0x8] sm:$0xff pattern:$0x75316420]
    %v70 = vld.sshfl [vmem:[#allocation1 + $0x10] sm:$0xff pattern:$0x75316420]
    %v71 = vld.sshfl [vmem:[#allocation1 + $0x18] sm:$0xff pattern:$0x75316420]
    %76 = vrot.lane.b32.xlu0 %v68, 17
    %v77 = vpop.permute.xlu0 %76
    %78 = vrot.lane.b32.xlu0 %v69, 17
    %v79 = vpop.permute.xlu0 %78
    %80 = vrot.lane.b32.xlu0 %v70, 17
    %v81 = vpop.permute.xlu0 %80
    %82 = vrot.lane.b32.xlu0 %v71, 17
    %v83 = vpop.permute.xlu0 %82
    %v84 = vlaneseq
    %v85 = vand.u32 %v84, 127
    %vm86 = vcmp.lt.s32.totalorder %v85, 17
    %v87 = vsel %vm86, %v81, %v83
    %v88 = vsel %vm86, %v79, %v81
    %v89 = vsel %vm86, %v77, %v79
    %v90 = vsel %vm86, %v83, %v77
    %v91 = vsel %vm55, 1, 0
    %v92 = vperm.slane %v91, 0
    %v93 = vperm.slane %v91, 1
    %v94 = vperm.slane %v91, 2
    %v95 = vperm.slane %v91, 3
    %vm96 = vcmp.eq.s32.totalorder %v92, 1
    %vm97 = vcmp.eq.s32.totalorder %v93, 1
    %vm98 = vcmp.eq.s32.totalorder %v94, 1
    %vm99 = vcmp.eq.s32.totalorder %v95, 1
    %v100 = vsel %vm96, %v90, 0.0
    %v101 = vsel %vm97, %v89, 0.0
    %v102 = vsel %vm98, %v88, 0.0
    %v103 = vsel %vm99, %v87, 0.0
    %104 = vst [vmem:[#allocation2] sm:$0xf] %v100
    %105 = vst [vmem:[#allocation2 + $0x8] sm:$0xf] %v101
    %106 = vst [vmem:[#allocation2 + $0x10] sm:$0xf] %v102
    %107 = vst [vmem:[#allocation2 + $0x18] sm:$0xf] %v103
    %108 = vst [vmem:[#allocation1] ss:$2 sm:$0xff] %v46
    %s109 = scalar_lea.vmem [#allocation1], 16
    %110 = vst [vmem:[%s109] ss:$2 sm:$0xff] %v47
    %v111 = vld.sshfl [vmem:[#allocation1] sm:$0xff pattern:$0x75316420]
    %v112 = vld.sshfl [vmem:[#allocation1 + $0x8] sm:$0xff pattern:$0x75316420]
    %v113 = vld.sshfl [vmem:[#allocation1 + $0x10] sm:$0xff pattern:$0x75316420]
    %v114 = vld.sshfl [vmem:[#allocation1 + $0x18] sm:$0xff pattern:$0x75316420]
    %119 = vrot.lane.b32.xlu0 %v111, 16
    %v120 = vpop.permute.xlu0 %119
    %121 = vrot.lane.b32.xlu0 %v112, 16
    %v122 = vpop.permute.xlu0 %121
    %123 = vrot.lane.b32.xlu0 %v113, 16
    %v124 = vpop.permute.xlu0 %123
    %125 = vrot.lane.b32.xlu0 %v114, 16
    %v126 = vpop.permute.xlu0 %125
    %vm127 = vcmp.lt.s32.totalorder %v85, 16
    %v128 = vsel %vm127, %v124, %v126
    %v129 = vsel %vm127, %v122, %v124
    %v130 = vsel %vm127, %v120, %v122
    %v131 = vsel %vm127, %v126, %v120
    %v132 = vsel %vm51, 1, 0
    %v133 = vperm.slane %v132, 0
    %v134 = vperm.slane %v132, 1
    %v135 = vperm.slane %v132, 2
    %v136 = vperm.slane %v132, 3
    %vm137 = vcmp.eq.s32.totalorder %v133, 1
    %vm138 = vcmp.eq.s32.totalorder %v134, 1
    %vm139 = vcmp.eq.s32.totalorder %v135, 1
    %vm140 = vcmp.eq.s32.totalorder %v136, 1
    %v141 = vsel %vm137, %v131, 0.0
    %v142 = vsel %vm138, %v130, 0.0
    %v143 = vsel %vm139, %v129, 0.0
    %v144 = vsel %vm140, %v128, 0.0
    %v149 = vrot.slane %v141, 4
    %v150 = vrot.slane %v142, 4
    %v151 = vrot.slane %v143, 4
    %v152 = vrot.slane %v144, 4
    %157 = vst [vmem:[#allocation2] sm:$0xf0] %v149
    %158 = vst [vmem:[#allocation2 + $0x8] sm:$0xf0] %v150
    %159 = vst [vmem:[#allocation2 + $0x10] sm:$0xf0] %v151
    %160 = vst [vmem:[#allocation2 + $0x18] sm:$0xf0] %v152
    %161 = vst [vmem:[#allocation1] ss:$2 sm:$0xff] %v46
    %s162 = scalar_lea.vmem [#allocation1], 16
    %163 = vst [vmem:[%s162] ss:$2 sm:$0xff] %v47
    %v164 = vld.sshfl [vmem:[#allocation1] sm:$0xff pattern:$0x75316420]
    %v165 = vld.sshfl [vmem:[#allocation1 + $0x8] sm:$0xff pattern:$0x75316420]
    %v166 = vld.sshfl [vmem:[#allocation1 + $0x10] sm:$0xff pattern:$0x75316420]
    %v167 = vld.sshfl [vmem:[#allocation1 + $0x18] sm:$0xff pattern:$0x75316420]
    %172 = vrot.lane.b32.xlu0 %v164, 15
    %v173 = vpop.permute.xlu0 %172
    %174 = vrot.lane.b32.xlu0 %v165, 15
    %v175 = vpop.permute.xlu0 %174
    %176 = vrot.lane.b32.xlu0 %v166, 15
    %v177 = vpop.permute.xlu0 %176
    %178 = vrot.lane.b32.xlu0 %v167, 15
    %v179 = vpop.permute.xlu0 %178
    %vm180 = vcmp.lt.s32.totalorder %v85, 15
    %v181 = vsel %vm180, %v177, %v179
    %v182 = vsel %vm180, %v175, %v177
    %v183 = vsel %vm180, %v173, %v175
    %v184 = vsel %vm180, %v179, %v173
    %v185 = vsel %vm56, 1, 0
    %v186 = vperm.slane %v185, 0
    %v187 = vperm.slane %v185, 1
    %v188 = vperm.slane %v185, 2
    %v189 = vperm.slane %v185, 3
    %vm190 = vcmp.eq.s32.totalorder %v186, 1
    %vm191 = vcmp.eq.s32.totalorder %v187, 1
    %vm192 = vcmp.eq.s32.totalorder %v188, 1
    %vm193 = vcmp.eq.s32.totalorder %v189, 1
    %v194 = vsel %vm190, %v184, 0.0
    %v195 = vsel %vm191, %v183, 0.0
    %v196 = vsel %vm192, %v182, 0.0
    %v197 = vsel %vm193, %v181, 0.0
    %198 = vst [vmem:[#allocation2 + $0x20] sm:$0xf] %v194
    %199 = vst [vmem:[#allocation2 + $0x28] sm:$0xf] %v195
    %200 = vst [vmem:[#allocation2 + $0x30] sm:$0xf] %v196
    %201 = vst [vmem:[#allocation2 + $0x38] sm:$0xf] %v197
    %202 = vst [vmem:[#allocation1] ss:$2 sm:$0xff] %v46
    %s203 = scalar_lea.vmem [#allocation1], 16
    %204 = vst [vmem:[%s203] ss:$2 sm:$0xff] %v47
    %v205 = vld.sshfl [vmem:[#allocation1] sm:$0xff pattern:$0x75316420]
    %v206 = vld.sshfl [vmem:[#allocation1 + $0x8] sm:$0xff pattern:$0x75316420]
    %v207 = vld.sshfl [vmem:[#allocation1 + $0x10] sm:$0xff pattern:$0x75316420]
    %v208 = vld.sshfl [vmem:[#allocation1 + $0x18] sm:$0xff pattern:$0x75316420]
    %213 = vrot.lane.b32.xlu0 %v205, 1
    %v214 = vpop.permute.xlu0 %213
    %215 = vrot.lane.b32.xlu0 %v206, 1
    %v216 = vpop.permute.xlu0 %215
    %217 = vrot.lane.b32.xlu0 %v207, 1
    %v218 = vpop.permute.xlu0 %217
    %219 = vrot.lane.b32.xlu0 %v208, 1
    %v220 = vpop.permute.xlu0 %219
    %vm221 = vcmp.lt.s32.totalorder %v85, 1
    %v222 = vsel %vm221, %v218, %v220
    %v223 = vsel %vm221, %v216, %v218
    %v224 = vsel %vm221, %v214, %v216
    %v225 = vsel %vm221, %v220, %v214
    %v226 = vsel %vm53, 1, 0
    %v227 = vperm.slane %v226, 0
    %v228 = vperm.slane %v226, 1
    %v229 = vperm.slane %v226, 2
    %v230 = vperm.slane %v226, 3
    %vm231 = vcmp.eq.s32.totalorder %v227, 1
    %vm232 = vcmp.eq.s32.totalorder %v228, 1
    %vm233 = vcmp.eq.s32.totalorder %v229, 1
    %vm234 = vcmp.eq.s32.totalorder %v230, 1
    %v235 = vsel %vm231, %v225, 0.0
    %v236 = vsel %vm232, %v224, 0.0
    %v237 = vsel %vm233, %v223, 0.0
    %v238 = vsel %vm234, %v222, 0.0
    %v243 = vrot.slane %v235, 4
    %v244 = vrot.slane %v236, 4
    %v245 = vrot.slane %v237, 4
    %v246 = vrot.slane %v238, 4
    %251 = vst [vmem:[#allocation2 + $0x20] sm:$0xf0] %v243
    %252 = vst [vmem:[#allocation2 + $0x28] sm:$0xf0] %v244
    %253 = vst [vmem:[#allocation2 + $0x30] sm:$0xf0] %v245
    %254 = vst [vmem:[#allocation2 + $0x38] sm:$0xf0] %v246
    %255 = vst [vmem:[#allocation1] ss:$2 sm:$0xff] %v46
    %s256 = scalar_lea.vmem [#allocation1], 16
    %257 = vst [vmem:[%s256] ss:$2 sm:$0xff] %v47
    %v258 = vld.sshfl [vmem:[#allocation1] sm:$0xff pattern:$0x75316420]
    %v259 = vld.sshfl [vmem:[#allocation1 + $0x8] sm:$0xff pattern:$0x75316420]
    %v260 = vld.sshfl [vmem:[#allocation1 + $0x10] sm:$0xff pattern:$0x75316420]
    %v261 = vld.sshfl [vmem:[#allocation1 + $0x18] sm:$0xff pattern:$0x75316420]
    %266 = vst [vmem:[#allocation2 + $0x40] sm:$0xf] %v258
    %267 = vst [vmem:[#allocation2 + $0x48] sm:$0xf] %v259
    %268 = vst [vmem:[#allocation2 + $0x50] sm:$0xf] %v260
    %269 = vst [vmem:[#allocation2 + $0x58] sm:$0xf] %v261
    %270 = vst [vmem:[#allocation1] ss:$2 sm:$0xff] %v46
    %s271 = scalar_lea.vmem [#allocation1], 16
    %272 = vst [vmem:[%s271] ss:$2 sm:$0xff] %v47
    %v273 = vld.sshfl [vmem:[#allocation1] sm:$0xff pattern:$0x75316420]
    %v274 = vld.sshfl [vmem:[#allocation1 + $0x8] sm:$0xff pattern:$0x75316420]
    %v275 = vld.sshfl [vmem:[#allocation1 + $0x10] sm:$0xff pattern:$0x75316420]
    %v276 = vld.sshfl [vmem:[#allocation1 + $0x18] sm:$0xff pattern:$0x75316420]
    %281 = vrot.lane.b32.xlu0 %v273, 127
    %v282 = vpop.permute.xlu0 %281
    %283 = vrot.lane.b32.xlu0 %v274, 127
    %v284 = vpop.permute.xlu0 %283
    %285 = vrot.lane.b32.xlu0 %v275, 127
    %v286 = vpop.permute.xlu0 %285
    %287 = vrot.lane.b32.xlu0 %v276, 127
    %v288 = vpop.permute.xlu0 %287
    %vm289 = vcmp.lt.s32.totalorder %v85, 127
    %v290 = vsel %vm289, %v286, %v288
    %v291 = vsel %vm289, %v284, %v286
    %v292 = vsel %vm289, %v282, %v284
    %v293 = vsel %vm289, %v288, %v282
    %v294 = vsel %vm54, 1, 0
    %v295 = vperm.slane %v294, 0
    %v296 = vperm.slane %v294, 1
    %v297 = vperm.slane %v294, 2
    %v298 = vperm.slane %v294, 3
    %vm299 = vcmp.eq.s32.totalorder %v295, 1
    %vm300 = vcmp.eq.s32.totalorder %v296, 1
    %vm301 = vcmp.eq.s32.totalorder %v297, 1
    %vm302 = vcmp.eq.s32.totalorder %v298, 1
    %v303 = vsel %vm299, %v292, 0.0
    %v304 = vsel %vm300, %v291, 0.0
    %v305 = vsel %vm301, %v290, 0.0
    %v306 = vsel %vm302, %v293, 0.0
    %v311 = vrot.slane %v303, 4
    %v312 = vrot.slane %v304, 4
    %v313 = vrot.slane %v305, 4
    %v314 = vrot.slane %v306, 4
    %319 = vst [vmem:[#allocation2 + $0x40] sm:$0xf0] %v311
    %320 = vst [vmem:[#allocation2 + $0x48] sm:$0xf0] %v312
    %321 = vst [vmem:[#allocation2 + $0x50] sm:$0xf0] %v313
    %322 = vst [vmem:[#allocation2 + $0x58] sm:$0xf0] %v314
    %323 = vst [vmem:[#allocation1] ss:$2 sm:$0xff] %v46
    %s324 = scalar_lea.vmem [#allocation1], 16
    %325 = vst [vmem:[%s324] ss:$2 sm:$0xff] %v47
    %v326 = vld.sshfl [vmem:[#allocation1] sm:$0xff pattern:$0x75316420]
    %v327 = vld.sshfl [vmem:[#allocation1 + $0x8] sm:$0xff pattern:$0x75316420]
    %v328 = vld.sshfl [vmem:[#allocation1 + $0x10] sm:$0xff pattern:$0x75316420]
    %v329 = vld.sshfl [vmem:[#allocation1 + $0x18] sm:$0xff pattern:$0x75316420]
    %334 = vrot.lane.b32.xlu0 %v326, 113
    %v335 = vpop.permute.xlu0 %334
    %336 = vrot.lane.b32.xlu0 %v327, 113
    %v337 = vpop.permute.xlu0 %336
    %338 = vrot.lane.b32.xlu0 %v328, 113
    %v339 = vpop.permute.xlu0 %338
    %340 = vrot.lane.b32.xlu0 %v329, 113
    %v341 = vpop.permute.xlu0 %340
    %vm342 = vcmp.lt.s32.totalorder %v85, 113
    %v343 = vsel %vm342, %v339, %v341
    %v344 = vsel %vm342, %v337, %v339
    %v345 = vsel %vm342, %v335, %v337
    %v346 = vsel %vm342, %v341, %v335
    %v347 = vsel %vm57, 1, 0
    %v348 = vperm.slane %v347, 0
    %v349 = vperm.slane %v347, 1
    %v350 = vperm.slane %v347, 2
    %v351 = vperm.slane %v347, 3
    %vm352 = vcmp.eq.s32.totalorder %v348, 1
    %vm353 = vcmp.eq.s32.totalorder %v349, 1
    %vm354 = vcmp.eq.s32.totalorder %v350, 1
    %vm355 = vcmp.eq.s32.totalorder %v351, 1
    %v356 = vsel %vm352, %v345, 0.0
    %v357 = vsel %vm353, %v344, 0.0
    %v358 = vsel %vm354, %v343, 0.0
    %v359 = vsel %vm355, %v346, 0.0
    %360 = vst [vmem:[#allocation2 + $0x60] sm:$0xf] %v356
    %361 = vst [vmem:[#allocation2 + $0x68] sm:$0xf] %v357
    %362 = vst [vmem:[#allocation2 + $0x70] sm:$0xf] %v358
    %363 = vst [vmem:[#allocation2 + $0x78] sm:$0xf] %v359
    %364 = vst [vmem:[#allocation1] ss:$2 sm:$0xff] %v46
    %s365 = scalar_lea.vmem [#allocation1], 16
    %366 = vst [vmem:[%s365] ss:$2 sm:$0xff] %v47
    %v367 = vld.sshfl [vmem:[#allocation1] sm:$0xff pattern:$0x75316420]
    %v368 = vld.sshfl [vmem:[#allocation1 + $0x8] sm:$0xff pattern:$0x75316420]
    %v369 = vld.sshfl [vmem:[#allocation1 + $0x10] sm:$0xff pattern:$0x75316420]
    %v370 = vld.sshfl [vmem:[#allocation1 + $0x18] sm:$0xff pattern:$0x75316420]
    %375 = vrot.lane.b32.xlu0 %v367, 112
    %v376 = vpop.permute.xlu0 %375
    %377 = vrot.lane.b32.xlu0 %v368, 112
    %v378 = vpop.permute.xlu0 %377
    %379 = vrot.lane.b32.xlu0 %v369, 112
    %v380 = vpop.permute.xlu0 %379
    %381 = vrot.lane.b32.xlu0 %v370, 112
    %v382 = vpop.permute.xlu0 %381
    %vm383 = vcmp.lt.s32.totalorder %v85, 112
    %v384 = vsel %vm383, %v380, %v382
    %v385 = vsel %vm383, %v378, %v380
    %v386 = vsel %vm383, %v376, %v378
    %v387 = vsel %vm383, %v382, %v376
    %v388 = vsel %vm52, 1, 0
    %v389 = vperm.slane %v388, 0
    %v390 = vperm.slane %v388, 1
    %v391 = vperm.slane %v388, 2
    %v392 = vperm.slane %v388, 3
    %vm393 = vcmp.eq.s32.totalorder %v389, 1
    %vm394 = vcmp.eq.s32.totalorder %v390, 1
    %vm395 = vcmp.eq.s32.totalorder %v391, 1
    %vm396 = vcmp.eq.s32.totalorder %v392, 1
    %v397 = vsel %vm393, %v386, 0.0
    %v398 = vsel %vm394, %v385, 0.0
    %v399 = vsel %vm395, %v384, 0.0
    %v400 = vsel %vm396, %v387, 0.0
    %v405 = vrot.slane %v397, 4
    %v406 = vrot.slane %v398, 4
    %v407 = vrot.slane %v399, 4
    %v408 = vrot.slane %v400, 4
    %413 = vst [vmem:[#allocation2 + $0x60] sm:$0xf0] %v405
    %414 = vst [vmem:[#allocation2 + $0x68] sm:$0xf0] %v406
    %415 = vst [vmem:[#allocation2 + $0x70] sm:$0xf0] %v407
    %416 = vst [vmem:[#allocation2 + $0x78] sm:$0xf0] %v408
    %417 = vst [vmem:[#allocation1] ss:$2 sm:$0xff] %v46
    %s418 = scalar_lea.vmem [#allocation1], 16
    %419 = vst [vmem:[%s418] ss:$2 sm:$0xff] %v47
    %v420 = vld.sshfl [vmem:[#allocation1] sm:$0xff pattern:$0x75316420]
    %v421 = vld.sshfl [vmem:[#allocation1 + $0x8] sm:$0xff pattern:$0x75316420]
    %v422 = vld.sshfl [vmem:[#allocation1 + $0x10] sm:$0xff pattern:$0x75316420]
    %v423 = vld.sshfl [vmem:[#allocation1 + $0x18] sm:$0xff pattern:$0x75316420]
    %428 = vrot.lane.b32.xlu0 %v420, 111
    %v429 = vpop.permute.xlu0 %428
    %430 = vrot.lane.b32.xlu0 %v421, 111
    %v431 = vpop.permute.xlu0 %430
    %432 = vrot.lane.b32.xlu0 %v422, 111
    %v433 = vpop.permute.xlu0 %432
    %434 = vrot.lane.b32.xlu0 %v423, 111
    %v435 = vpop.permute.xlu0 %434
    %vm436 = vcmp.lt.s32.totalorder %v85, 111
    %v437 = vsel %vm436, %v433, %v435
    %v438 = vsel %vm436, %v431, %v433
    %v439 = vsel %vm436, %v429, %v431
    %v440 = vsel %vm436, %v435, %v429
    %v441 = vsel %vm58, 1, 0
    %v442 = vperm.slane %v441, 0
    %v443 = vperm.slane %v441, 1
    %v444 = vperm.slane %v441, 2
    %v445 = vperm.slane %v441, 3
    %vm446 = vcmp.eq.s32.totalorder %v442, 1
    %vm447 = vcmp.eq.s32.totalorder %v443, 1
    %vm448 = vcmp.eq.s32.totalorder %v444, 1
    %vm449 = vcmp.eq.s32.totalorder %v445, 1
    %v450 = vsel %vm446, %v439, 0.0
    %v451 = vsel %vm447, %v438, 0.0
    %v452 = vsel %vm448, %v437, 0.0
    %v453 = vsel %vm449, %v440, 0.0
    %454 = vst [vmem:[#allocation2 + $0x80] sm:$0xf] %v450
    %455 = vst [vmem:[#allocation2 + $0x88] sm:$0xf] %v451
    %456 = vst [vmem:[#allocation2 + $0x90] sm:$0xf] %v452
    %457 = vst [vmem:[#allocation2 + $0x98] sm:$0xf] %v453
    %v458 = vld [vmem:[%s1] sm:$0xf]
    %v459 = vld [vmem:[#allocation2] sm:$0xff]
    %v460 = vld [vmem:[#allocation2 + $0x8] sm:$0xff]
    %v461 = vld [vmem:[#allocation2 + $0x10] sm:$0xff]
    %v462 = vld [vmem:[#allocation2 + $0x18] sm:$0xff]
    %v463 = vld [vmem:[#allocation2 + $0x20] sm:$0xff]
    %v464 = vld [vmem:[#allocation2 + $0x28] sm:$0xff]
    %v465 = vld [vmem:[#allocation2 + $0x30] sm:$0xff]
    %v466 = vld [vmem:[#allocation2 + $0x38] sm:$0xff]
    %v467 = vld [vmem:[#allocation2 + $0x40] sm:$0xff]
    %v468 = vld [vmem:[#allocation2 + $0x48] sm:$0xff]
    %v469 = vld [vmem:[#allocation2 + $0x50] sm:$0xff]
    %v470 = vld [vmem:[#allocation2 + $0x58] sm:$0xff]
    %v471 = vld [vmem:[#allocation2 + $0x60] sm:$0xff]
    %v472 = vld [vmem:[#allocation2 + $0x68] sm:$0xff]
    %v473 = vld [vmem:[#allocation2 + $0x70] sm:$0xff]
    %v474 = vld [vmem:[#allocation2 + $0x78] sm:$0xff]
    %v475 = vld [vmem:[#allocation2 + $0x80] sm:$0xff]
    %v476 = vld [vmem:[#allocation2 + $0x88] sm:$0xff]
    %v477 = vld [vmem:[#allocation2 + $0x90] sm:$0xff]
    %v478 = vld [vmem:[#allocation2 + $0x98] sm:$0xff]
    %v479 = vld [vmem:[%s2] sm:$0xf]
    %481 = vset.pattern.permute.xlu0 0
    %482 = vperm.xlu0 %481, %v479
    %v483 = vpop.permute.xlu0 %482
    %vm485 = vcmask 326656
    %v487 = vsel %vm485, %v458, 0
    %489 = vmatpush.msra.mxu0 0.0
    %490 = vmatpush.msra.mxu0 0.0
    %491 = vmatpush.msra.mxu0 0.0
    %492 = vmatpush.msra.mxu0 0.0
    %493 = vmatpush.msra.mxu0 0.0
    %494 = vmatpush.msra.mxu0 0.0
    %495 = vmatpush.msra.mxu0 0.0
    %496 = vmatpush.msra.mxu0 0.0
    %497 = vmatpush.msra.mxu0 0.0
    %498 = vmatpush.msra.mxu0 0.0
    %499 = vmatpush.msra.mxu0 0.0
    %500 = vmatpush.msra.mxu0 %v475
    %501 = vmatpush.msra.mxu0 %v471
    %502 = vmatpush.msra.mxu0 %v467
    %503 = vmatpush.msra.mxu0 %v463
    %504 = vmatpush.msra.mxu0 %v459
    %505 = vmatmul.f32.gmra.mxu0 %v487
    %v506 = vpop.f32.mrf.mxu0
    %v507 = vadd.f32 %v483, %v506
    %508 = vdwg.mxu0
    %509 = vmatpush.msra.mxu0 0.0
    %510 = vmatpush.msra.mxu0 0.0
    %511 = vmatpush.msra.mxu0 0.0
    %512 = vmatpush.msra.mxu0 0.0
    %513 = vmatpush.msra.mxu0 0.0
    %514 = vmatpush.msra.mxu0 0.0
    %515 = vmatpush.msra.mxu0 0.0
    %516 = vmatpush.msra.mxu0 0.0
    %517 = vmatpush.msra.mxu0 0.0
    %518 = vmatpush.msra.mxu0 0.0
    %519 = vmatpush.msra.mxu0 0.0
    %520 = vmatpush.msra.mxu0 %v476
    %521 = vmatpush.msra.mxu0 %v472
    %522 = vmatpush.msra.mxu0 %v468
    %523 = vmatpush.msra.mxu0 %v464
    %524 = vmatpush.msra.mxu0 %v460
    %525 = vmatmul.f32.gmra.mxu0 %v487
    %v526 = vpop.f32.mrf.mxu0
    %v527 = vadd.f32 %v483, %v526
    %528 = vdwg.mxu0
    %529 = vmatpush.msra.mxu0 0.0
    %530 = vmatpush.msra.mxu0 0.0
    %531 = vmatpush.msra.mxu0 0.0
    %532 = vmatpush.msra.mxu0 0.0
    %533 = vmatpush.msra.mxu0 0.0
    %534 = vmatpush.msra.mxu0 0.0
    %535 = vmatpush.msra.mxu0 0.0
    %536 = vmatpush.msra.mxu0 0.0
    %537 = vmatpush.msra.mxu0 0.0
    %538 = vmatpush.msra.mxu0 0.0
    %539 = vmatpush.msra.mxu0 0.0
    %540 = vmatpush.msra.mxu0 %v477
    %541 = vmatpush.msra.mxu0 %v473
    %542 = vmatpush.msra.mxu0 %v469
    %543 = vmatpush.msra.mxu0 %v465
    %544 = vmatpush.msra.mxu0 %v461
    %545 = vmatmul.f32.gmra.mxu0 %v487
    %v546 = vpop.f32.mrf.mxu0
    %v547 = vadd.f32 %v483, %v546
    %548 = vdwg.mxu0
    %549 = vmatpush.msra.mxu0 0.0
    %550 = vmatpush.msra.mxu0 0.0
    %551 = vmatpush.msra.mxu0 0.0
    %552 = vmatpush.msra.mxu0 0.0
    %553 = vmatpush.msra.mxu0 0.0
    %554 = vmatpush.msra.mxu0 0.0
    %555 = vmatpush.msra.mxu0 0.0
    %556 = vmatpush.msra.mxu0 0.0
    %557 = vmatpush.msra.mxu0 0.0
    %558 = vmatpush.msra.mxu0 0.0
    %559 = vmatpush.msra.mxu0 0.0
    %560 = vmatpush.msra.mxu0 %v478
    %561 = vmatpush.msra.mxu0 %v474
    %562 = vmatpush.msra.mxu0 %v470
    %563 = vmatpush.msra.mxu0 %v466
    %564 = vmatpush.msra.mxu0 %v462
    %565 = vmatmul.f32.gmra.mxu0 %v487
    %v566 = vpop.f32.mrf.mxu0
    %v567 = vadd.f32 %v483, %v566
    %568 = vdwg.mxu0
    %v569 = vmax.f32 %v507, 0.0
    %v570 = vmax.f32 %v527, 0.0
    %v571 = vmax.f32 %v547, 0.0
    %v572 = vmax.f32 %v567, 0.0
    %s573 = scalar_lea.vmem [#allocation1], 1
    %574 = vst [vmem:[%s573] ss:$2 sm:$0xff] %v46
    %s575 = scalar_lea.vmem [#allocation1], 17
    %576 = vst [vmem:[%s575] ss:$2 sm:$0xff] %v47
    %v577 = vld.sshfl [vmem:[#allocation1] sm:$0xff pattern:$0x75316420]
    %v578 = vld.sshfl [vmem:[#allocation1 + $0x8] sm:$0xff pattern:$0x75316420]
    %v579 = vld.sshfl [vmem:[#allocation1 + $0x10] sm:$0xff pattern:$0x75316420]
    %v580 = vld.sshfl [vmem:[#allocation1 + $0x18] sm:$0xff pattern:$0x75316420]
    %vm585 = vcmask 1043456
    %v586 = vsel %vm585, %v569, %v577
    %v587 = vsel %vm585, %v570, %v578
    %v588 = vsel %vm585, %v571, %v579
    %v589 = vsel %vm585, %v572, %v580
    %590 = vst [vmem:[#allocation8] sm:$0xff] %v586
    %591 = vst [vmem:[#allocation8 + $0x8] sm:$0xff] %v587
    %592 = vst [vmem:[#allocation8 + $0x10] sm:$0xff] %v588
    %593 = vst [vmem:[#allocation8 + $0x18] sm:$0xff] %v589
    // Predicated region
    $region26: #{tpu_custom_call.1} parent=1 // pred_check
      _
    $region27: #{tpu_custom_call.1} parent=1 // pred_check_branch
      %595 = sbr.rel (0) target = $region29
    $region28: #{tpu_custom_call.1} parent=1 // pred_region
      %597 = vsyncadd [#allocation5], 0
      %s599 = sshll.u32 [#allocation8], 4
      %s600 = int_to_ptr.vmem [resolvable:$true] %s599
      %s601 = sshll.u32 %s4, 4
      %s602 = int_to_ptr.hbm [resolvable:$true] %s601
      %604 = dma.vmem_to_hbm [thread:$0]  %s600, 512, %s602, [#allocation5]
    $region29: #{tpu_custom_call.1} parent=1 // pred_fallthru
      _
    // Predicated region
    $region30: #{tpu_custom_call.1} parent=1 // pred_check
      _
    $region31: #{tpu_custom_call.1} parent=1 // pred_check_branch
      %606 = sbr.rel (0) target = $region33
    $region32: #{tpu_custom_call.1} parent=1 // pred_region
      %608 = dma.done [#allocation5], 512
    $region33: #{tpu_custom_call.1} parent=1 // pred_fallthru
      _
    %609 = vsyncpa [#allocation4], 1
    %610 = vsyncpa [#allocation7], 1
    %611 = vsyncpa [#allocation5], 1

</llo_original>
